<compile_context>
chip_gen: v6e
topology: v6e:2x2x1
jax: 0.10.0
libtpu: 0.0.40
codegen_flags: <defaults>
</compile_context>

<pallas_src>
import numpy as np
import jax
import jax.numpy as jnp
from jax.experimental import pallas as pl
from jax.experimental.pallas import tpu as pltpu

# ----------------------------- problem sizes ------------------------------------
N_NODES = 256        # total nodes
INPUT_SIZE = 16      # raw node-feature dim
HIDDEN = 128         # hidden_channels
OUT_CHANNELS = 64    # out_channels


# ------------------------------- Pallas kernel ----------------------------------
def fused_gcn_kernel(a_ref, x_ref, w1_ref, b1_ref, w2_ref, b2_ref, o_ref):
    """Fused 2-layer GCN on the whole (small) graph, fully VMEM-resident.

    Layer 1 (transform-then-aggregate):  h1 = relu(A @ (x @ W1) + b1)
    Layer 2 (transform-then-aggregate):  out = A @ (h1 @ W2) + b2
    All matmuls run on the MXU in bf16 with f32 accumulation; h1 stays on-chip.
    """
    a = a_ref[...]                                                    # (N, N) bf16

    # ---- layer 1 ----
    xw1 = jnp.dot(x_ref[...], w1_ref[...],
                  preferred_element_type=jnp.float32)                 # (N, HIDDEN) f32, K=16
    h1 = jnp.dot(a, xw1.astype(jnp.bfloat16),
                 preferred_element_type=jnp.float32) + b1_ref[...]    # (N, HIDDEN) f32
    h1 = jnp.maximum(h1, 0.0).astype(jnp.bfloat16)                    # ReLU, keep in VMEM

    # ---- layer 2 ----
    hw2 = jnp.dot(h1, w2_ref[...],
                  preferred_element_type=jnp.float32)                 # (N, OUT) f32
    out = jnp.dot(a, hw2.astype(jnp.bfloat16),
                  preferred_element_type=jnp.float32) + b2_ref[...]   # (N, OUT) f32

    o_ref[...] = out


def gnn_forward_pallas(x, a_norm, w1, b1, w2, b2):
    """GNN.forward: GCNConv1 -> ReLU -> GCNConv2, one fused pallas_call."""
    n, f_in = x.shape
    hidden = w1.shape[1]
    c_out = w2.shape[1]

    a_bf = a_norm.astype(jnp.bfloat16)
    x_bf = x.astype(jnp.bfloat16)
    w1_bf = w1.astype(jnp.bfloat16)
    w2_bf = w2.astype(jnp.bfloat16)

    flops = 2 * (n * f_in * hidden          # x @ W1
                 + n * n * hidden           # A @ (xW1)
                 + n * hidden * c_out       # h1 @ W2
                 + n * n * c_out)           # A @ (h1W2)
    bytes_accessed = (a_bf.size * 2 + x_bf.size * 2 + w1_bf.size * 2 + b1.size * 4
                      + w2_bf.size * 2 + b2.size * 4 + n * c_out * 4)

    vmem_spec = pl.BlockSpec(memory_space=pltpu.MemorySpace.VMEM)  # whole array in VMEM
    return pl.pallas_call(
        fused_gcn_kernel,
        out_shape=jax.ShapeDtypeStruct((n, c_out), jnp.float32),
        in_specs=[vmem_spec] * 6,
        out_specs=vmem_spec,
        cost_estimate=pl.CostEstimate(flops=flops, transcendentals=0,
                                      bytes_accessed=bytes_accessed),
    )(a_bf, x_bf, w1_bf, b1, w2_bf, b2)


# --------------------------- pure-JAX f32 reference -------------------------------
def reference_forward(x, a_norm, w1, b1, w2, b2):
    mm = lambda u, v: jnp.dot(u, v, precision=jax.lax.Precision.HIGHEST)
    h1 = jnp.maximum(mm(a_norm, mm(x, w1)) + b1, 0.0)
    return mm(a_norm, mm(h1, w2)) + b2


# ------------------------------------- main ---------------------------------------
if __name__ == "__main__":
    key = jax.random.PRNGKey(0)
    k_x, k_w1, k_b1, k_w2, k_b2 = jax.random.split(key, 5)

    # deterministic graph: bidirectional ring over N_NODES nodes
    idx = np.arange(N_NODES)
    src = np.concatenate([idx, (idx + 1) % N_NODES])
    dst = np.concatenate([(idx + 1) % N_NODES, idx])
    edge_index = np.stack([src, dst]).astype(np.int32)            # (2, E)

    # GCN normalized adjacency with self-loops (host-side glue)
    a = np.zeros((N_NODES, N_NODES), np.float32)
    a[edge_index[1], edge_index[0]] = 1.0                         # message src -> dst
    a_hat = a + np.eye(N_NODES, dtype=np.float32)
    d_inv_sqrt = 1.0 / np.sqrt(a_hat.sum(axis=1))
    a_norm = jnp.asarray(d_inv_sqrt[:, None] * a_hat * d_inv_sqrt[None, :])

    # node features + GCNConv parameters
    x = jax.random.normal(k_x, (N_NODES, INPUT_SIZE), jnp.float32)
    s1 = 1.0 / np.sqrt(INPUT_SIZE)
    s2 = 1.0 / np.sqrt(HIDDEN)
    w1 = jax.random.normal(k_w1, (INPUT_SIZE, HIDDEN), jnp.float32) * s1
    b1 = jax.random.normal(k_b1, (1, HIDDEN), jnp.float32) * s1
    w2 = jax.random.normal(k_w2, (HIDDEN, OUT_CHANNELS), jnp.float32) * s2
    b2 = jax.random.normal(k_b2, (1, OUT_CHANNELS), jnp.float32) * s2

    out = jax.block_until_ready(gnn_forward_pallas(x, a_norm, w1, b1, w2, b2))
    ref = reference_forward(x, a_norm, w1, b1, w2, b2)

    out_np, ref_np = np.asarray(out), np.asarray(ref)
    rel = np.linalg.norm(out_np - ref_np) / np.linalg.norm(ref_np)
    max_abs = np.max(np.abs(out_np - ref_np))
    if not (rel < 3e-2 and max_abs < 0.1):   # bf16-MXU tolerance vs f32 reference
        raise AssertionError(
            f"mismatch: rel_frobenius={rel:.3e} max_abs_diff={max_abs:.3e}")

    print("KERNEL_OK")
</pallas_src>

<mosaic_0001>
module attributes {stable_mosaic.version = 11 : i64} {
  func.func @fused_gcn_kernel(%arg0: memref<256x256xbf16, #tpu.memory_space<vmem>>, %arg1: memref<256x16xbf16, #tpu.memory_space<vmem>>, %arg2: memref<16x128xbf16, #tpu.memory_space<vmem>>, %arg3: memref<1x128xf32, #tpu.memory_space<vmem>>, %arg4: memref<128x64xbf16, #tpu.memory_space<vmem>>, %arg5: memref<1x64xf32, #tpu.memory_space<vmem>>, %arg6: memref<256x64xf32, #tpu.memory_space<vmem>>) attributes {dimension_semantics = [], scalar_prefetch = 0 : i64, scratch_operands = 0 : i64, tpu.core_type = #tpu.core_type<tc>} {
    %c0 = arith.constant 0 : index
    %c0_0 = arith.constant 0 : index
    %0 = vector.load %arg0[%c0, %c0_0] : memref<256x256xbf16, #tpu.memory_space<vmem>>, vector<256x256xbf16>
    %c0_1 = arith.constant 0 : index
    %c0_2 = arith.constant 0 : index
    %1 = vector.load %arg1[%c0_1, %c0_2] : memref<256x16xbf16, #tpu.memory_space<vmem>>, vector<256x16xbf16>
    %c0_3 = arith.constant 0 : index
    %c0_4 = arith.constant 0 : index
    %2 = vector.load %arg2[%c0_3, %c0_4] : memref<16x128xbf16, #tpu.memory_space<vmem>>, vector<16x128xbf16>
    %cst = arith.constant dense<0.000000e+00> : vector<256x128xf32>
    %3 = tpu.matmul %1, %2, %cst {dimension_numbers = #tpu.dot_dimension_numbers<[1], [0], [0], [1], [0, 0, 1, 1], [], []>} : vector<256x16xbf16>, vector<16x128xbf16>, vector<256x128xf32> -> vector<256x128xf32>
    %4 = arith.truncf %3 : vector<256x128xf32> to vector<256x128xbf16>
    %cst_5 = arith.constant dense<0.000000e+00> : vector<256x128xf32>
    %5 = tpu.matmul %0, %4, %cst_5 {dimension_numbers = #tpu.dot_dimension_numbers<[1], [0], [0], [1], [0, 0, 1, 1], [], []>} : vector<256x256xbf16>, vector<256x128xbf16>, vector<256x128xf32> -> vector<256x128xf32>
    %c0_6 = arith.constant 0 : index
    %c0_7 = arith.constant 0 : index
    %6 = vector.load %arg3[%c0_6, %c0_7] : memref<1x128xf32, #tpu.memory_space<vmem>>, vector<1x128xf32>
    %7 = vector.broadcast %6 : vector<1x128xf32> to vector<256x128xf32>
    %8 = arith.addf %5, %7 : vector<256x128xf32>
    %cst_8 = arith.constant 0.000000e+00 : f32
    %9 = vector.broadcast %cst_8 : f32 to vector<256x128xf32>
    %10 = arith.maximumf %8, %9 : vector<256x128xf32>
    %11 = arith.truncf %10 : vector<256x128xf32> to vector<256x128xbf16>
    %c0_9 = arith.constant 0 : index
    %c0_10 = arith.constant 0 : index
    %12 = vector.load %arg4[%c0_9, %c0_10] : memref<128x64xbf16, #tpu.memory_space<vmem>>, vector<128x64xbf16>
    %cst_11 = arith.constant dense<0.000000e+00> : vector<256x64xf32>
    %13 = tpu.matmul %11, %12, %cst_11 {dimension_numbers = #tpu.dot_dimension_numbers<[1], [0], [0], [1], [0, 0, 1, 1], [], []>} : vector<256x128xbf16>, vector<128x64xbf16>, vector<256x64xf32> -> vector<256x64xf32>
    %14 = arith.truncf %13 : vector<256x64xf32> to vector<256x64xbf16>
    %cst_12 = arith.constant dense<0.000000e+00> : vector<256x64xf32>
    %15 = tpu.matmul %0, %14, %cst_12 {dimension_numbers = #tpu.dot_dimension_numbers<[1], [0], [0], [1], [0, 0, 1, 1], [], []>} : vector<256x256xbf16>, vector<256x64xbf16>, vector<256x64xf32> -> vector<256x64xf32>
    %c0_13 = arith.constant 0 : index
    %c0_14 = arith.constant 0 : index
    %16 = vector.load %arg5[%c0_13, %c0_14] : memref<1x64xf32, #tpu.memory_space<vmem>>, vector<1x64xf32>
    %17 = vector.broadcast %16 : vector<1x64xf32> to vector<256x64xf32>
    %18 = arith.addf %15, %17 : vector<256x64xf32>
    %c0_15 = arith.constant 0 : index
    %c0_16 = arith.constant 0 : index
    %19 = vector.load %arg6[%c0_15, %c0_16] : memref<256x64xf32, #tpu.memory_space<vmem>>, vector<256x64xf32>
    tpu.vector_store %arg6[%c0_15, %c0_16], %18 {strides = array<i32>} : memref<256x64xf32, #tpu.memory_space<vmem>>, vector<256x64xf32>,
    return
  }
}

</mosaic_0001>

<llo_original>
// kernel: tpu_custom_call.1
$region0: #{tpu_custom_call.1}
  #allocation0 [shape = 'u32[]', space=smem, size = 0x4, offset = 0x4, fixed_abs, tag = 'smem constant byte address 0x4 - core index']
  #allocation1 [shape = 'u32[144,128]{1,0:T(1,128)}', space=vmem, size = 0x12000, scoped, tag = 'internal scratch']
  %s0 = inlined_call_operand.hbm [shape: bf16[256,256], index: 0, kind: input, shape index: {}]
  %s1 = inlined_call_operand.vmem [shape: bf16[256,16], index: 1, kind: input, shape index: {}]
  %s2 = inlined_call_operand.vmem [shape: bf16[16,128], index: 2, kind: input, shape index: {}]
  %s3 = inlined_call_operand.vmem [shape: f32[1,128], index: 3, kind: input, shape index: {}]
  %s4 = inlined_call_operand.vmem [shape: bf16[128,64], index: 4, kind: input, shape index: {}]
  %s5 = inlined_call_operand.vmem [shape: f32[1,64], index: 5, kind: input, shape index: {}]
  %s6 = inlined_call_operand.vmem [shape: f32[256,64], index: 6, kind: output, shape index: {}]
  %s7 = sld [smem:[#allocation0]]
  $region38: #{tpu_custom_call.1} parent=0
    _
  %s9 = ssub.s32 1, %s7
  %s10 = scalar_select 0, %s9, %s7
  $region1: #{tpu_custom_call.1} parent=0
    #allocation2 [shape = 'u8[131072]{0}', space=vmem, size = 0x20000, scoped, tag = 'input window, operand 0, single buffered']
    #allocation3 [shape = 's32[1]{0}', space=sflag, size = 0x4, scoped, tag = 'scoped memory for tpu_custom_call.1']
    %11 = vsyncpa [#allocation3], 0
    // Predicated region
    $region2: #{tpu_custom_call.1} parent=1 // pred_check
      _
    $region3: #{tpu_custom_call.1} parent=1 // pred_check_branch
      %13 = sbr.rel (0) target = $region5
    $region4: #{tpu_custom_call.1} parent=1 // pred_region
      %s15 = ssub.s32 4096, 4096
      %16 = vsyncadd [#allocation3], %s15
      %s17 = sshll.u32 [#allocation2], 4
      %s18 = int_to_ptr.vmem [resolvable:$true] %s17
      %23 = dma.hbm_to_vmem [thread:$0]  %s0, 4096, %s18, [#allocation3], 128, 128, 8
    $region5: #{tpu_custom_call.1} parent=1 // pred_fallthru
      _
    // Predicated region
    $region6: #{tpu_custom_call.1} parent=1 // pred_check
      _
    $region7: #{tpu_custom_call.1} parent=1 // pred_check_branch
      %25 = sbr.rel (0) target = $region9
    $region8: #{tpu_custom_call.1} parent=1 // pred_region
      _
    $region9: #{tpu_custom_call.1} parent=1 // pred_fallthru
      _
    // Predicated region
    $region10: #{tpu_custom_call.1} parent=1 // pred_check
      _
    $region11: #{tpu_custom_call.1} parent=1 // pred_check_branch
      %27 = sbr.rel (0) target = $region13
    $region12: #{tpu_custom_call.1} parent=1 // pred_region
      _
    $region13: #{tpu_custom_call.1} parent=1 // pred_fallthru
      _
    // Predicated region
    $region14: #{tpu_custom_call.1} parent=1 // pred_check
      _
    $region15: #{tpu_custom_call.1} parent=1 // pred_check_branch
      %29 = sbr.rel (0) target = $region17
    $region16: #{tpu_custom_call.1} parent=1 // pred_region
      _
    $region17: #{tpu_custom_call.1} parent=1 // pred_fallthru
      _
    // Predicated region
    $region18: #{tpu_custom_call.1} parent=1 // pred_check
      _
    $region19: #{tpu_custom_call.1} parent=1 // pred_check_branch
      %31 = sbr.rel (0) target = $region21
    $region20: #{tpu_custom_call.1} parent=1 // pred_region
      _
    $region21: #{tpu_custom_call.1} parent=1 // pred_fallthru
      _
    // Predicated region
    $region22: #{tpu_custom_call.1} parent=1 // pred_check
      _
    $region23: #{tpu_custom_call.1} parent=1 // pred_check_branch
      %33 = sbr.rel (0) target = $region25
    $region24: #{tpu_custom_call.1} parent=1 // pred_region
      _
    $region25: #{tpu_custom_call.1} parent=1 // pred_fallthru
      _
    // Predicated region
    $region26: #{tpu_custom_call.1} parent=1 // pred_check
      _
    $region27: #{tpu_custom_call.1} parent=1 // pred_check_branch
      %35 = sbr.rel (0) target = $region29
    $region28: #{tpu_custom_call.1} parent=1 // pred_region
      %36 = dma.done [#allocation3], 4096
    $region29: #{tpu_custom_call.1} parent=1 // pred_fallthru
      _
    %v38 = vld [vmem:[#allocation2] sm:$0xff]
    %v39 = vld [vmem:[#allocation2 + $0x8] sm:$0xff]
    %v40 = vld [vmem:[#allocation2 + $0x10] sm:$0xff]
    %v41 = vld [vmem:[#allocation2 + $0x18] sm:$0xff]
    %v42 = vld [vmem:[#allocation2 + $0x20] sm:$0xff]
    %v43 = vld [vmem:[#allocation2 + $0x28] sm:$0xff]
    %v44 = vld [vmem:[#allocation2 + $0x30] sm:$0xff]
    %v45 = vld [vmem:[#allocation2 + $0x38] sm:$0xff]
    %v46 = vld [vmem:[#allocation2 + $0x40] sm:$0xff]
    %v47 = vld [vmem:[#allocation2 + $0x48] sm:$0xff]
    %v48 = vld [vmem:[#allocation2 + $0x50] sm:$0xff]
    %v49 = vld [vmem:[#allocation2 + $0x58] sm:$0xff]
    %v50 = vld [vmem:[#allocation2 + $0x60] sm:$0xff]
    %v51 = vld [vmem:[#allocation2 + $0x68] sm:$0xff]
    %v52 = vld [vmem:[#allocation2 + $0x70] sm:$0xff]
    %v53 = vld [vmem:[#allocation2 + $0x78] sm:$0xff]
    %v54 = vld [vmem:[#allocation2 + $0x80] sm:$0xff]
    %v55 = vld [vmem:[#allocation2 + $0x88] sm:$0xff]
    %v56 = vld [vmem:[#allocation2 + $0x90] sm:$0xff]
    %v57 = vld [vmem:[#allocation2 + $0x98] sm:$0xff]
    %v58 = vld [vmem:[#allocation2 + $0xa0] sm:$0xff]
    %v59 = vld [vmem:[#allocation2 + $0xa8] sm:$0xff]
    %v60 = vld [vmem:[#allocation2 + $0xb0] sm:$0xff]
    %v61 = vld [vmem:[#allocation2 + $0xb8] sm:$0xff]
    %v62 = vld [vmem:[#allocation2 + $0xc0] sm:$0xff]
    %v63 = vld [vmem:[#allocation2 + $0xc8] sm:$0xff]
    %v64 = vld [vmem:[#allocation2 + $0xd0] sm:$0xff]
    %v65 = vld [vmem:[#allocation2 + $0xd8] sm:$0xff]
    %v66 = vld [vmem:[#allocation2 + $0xe0] sm:$0xff]
    %v67 = vld [vmem:[#allocation2 + $0xe8] sm:$0xff]
    %v68 = vld [vmem:[#allocation2 + $0xf0] sm:$0xff]
    %v69 = vld [vmem:[#allocation2 + $0xf8] sm:$0xff]
    %v70 = vld [vmem:[%s1] sm:$0xf]
    %v71 = vld [vmem:[%s1 + $0x4] sm:$0xf]
    %v72 = vld [vmem:[%s1 + $0x8] sm:$0xf]
    %v73 = vld [vmem:[%s1 + $0xc] sm:$0xf]
    %v74 = vld [vmem:[%s1 + $0x10] sm:$0xf]
    %v75 = vld [vmem:[%s1 + $0x14] sm:$0xf]
    %v76 = vld [vmem:[%s1 + $0x18] sm:$0xf]
    %v77 = vld [vmem:[%s1 + $0x1c] sm:$0xf]
    %v78 = vld [vmem:[%s1 + $0x20] sm:$0xf]
    %v79 = vld [vmem:[%s1 + $0x24] sm:$0xf]
    %v80 = vld [vmem:[%s1 + $0x28] sm:$0xf]
    %v81 = vld [vmem:[%s1 + $0x2c] sm:$0xf]
    %v82 = vld [vmem:[%s1 + $0x30] sm:$0xf]
    %v83 = vld [vmem:[%s1 + $0x34] sm:$0xf]
    %v84 = vld [vmem:[%s1 + $0x38] sm:$0xf]
    %v85 = vld [vmem:[%s1 + $0x3c] sm:$0xf]
    %v86 = vld [vmem:[%s1 + $0x40] sm:$0xf]
    %v87 = vld [vmem:[%s1 + $0x44] sm:$0xf]
    %v88 = vld [vmem:[%s1 + $0x48] sm:$0xf]
    %v89 = vld [vmem:[%s1 + $0x4c] sm:$0xf]
    %v90 = vld [vmem:[%s1 + $0x50] sm:$0xf]
    %v91 = vld [vmem:[%s1 + $0x54] sm:$0xf]
    %v92 = vld [vmem:[%s1 + $0x58] sm:$0xf]
    %v93 = vld [vmem:[%s1 + $0x5c] sm:$0xf]
    %v94 = vld [vmem:[%s1 + $0x60] sm:$0xf]
    %v95 = vld [vmem:[%s1 + $0x64] sm:$0xf]
    %v96 = vld [vmem:[%s1 + $0x68] sm:$0xf]
    %v97 = vld [vmem:[%s1 + $0x6c] sm:$0xf]
    %v98 = vld [vmem:[%s1 + $0x70] sm:$0xf]
    %v99 = vld [vmem:[%s1 + $0x74] sm:$0xf]
    %v100 = vld [vmem:[%s1 + $0x78] sm:$0xf]
    %v101 = vld [vmem:[%s1 + $0x7c] sm:$0xf]
    %v102 = vld [vmem:[%s2] sm:$0xf]
    %v103 = vld [vmem:[%s2 + $0x4] sm:$0xf]
    %v136 = vunpack.c.l.b16 %v70
    %v137 = vunpack.c.l.b16 %v71
    %v138 = vunpack.c.l.b16 %v72
    %v139 = vunpack.c.l.b16 %v73
    %v140 = vunpack.c.l.b16 %v74
    %v141 = vunpack.c.l.b16 %v75
    %v142 = vunpack.c.l.b16 %v76
    %v143 = vunpack.c.l.b16 %v77
    %v144 = vunpack.c.l.b16 %v78
    %v145 = vunpack.c.l.b16 %v79
    %v146 = vunpack.c.l.b16 %v80
    %v147 = vunpack.c.l.b16 %v81
    %v148 = vunpack.c.l.b16 %v82
    %v149 = vunpack.c.l.b16 %v83
    %v150 = vunpack.c.l.b16 %v84
    %v151 = vunpack.c.l.b16 %v85
    %v152 = vunpack.c.l.b16 %v86
    %v153 = vunpack.c.l.b16 %v87
    %v154 = vunpack.c.l.b16 %v88
    %v155 = vunpack.c.l.b16 %v89
    %v156 = vunpack.c.l.b16 %v90
    %v157 = vunpack.c.l.b16 %v91
    %v158 = vunpack.c.l.b16 %v92
    %v159 = vunpack.c.l.b16 %v93
    %v160 = vunpack.c.l.b16 %v94
    %v161 = vunpack.c.l.b16 %v95
    %v162 = vunpack.c.l.b16 %v96
    %v163 = vunpack.c.l.b16 %v97
    %v164 = vunpack.c.l.b16 %v98
    %v165 = vunpack.c.l.b16 %v99
    %v166 = vunpack.c.l.b16 %v100
    %v167 = vunpack.c.l.b16 %v101
    %v168 = vpack.c.b16 %v137, %v136
    %v169 = vpack.c.b16 %v139, %v138
    %v170 = vpack.c.b16 %v141, %v140
    %v171 = vpack.c.b16 %v143, %v142
    %v172 = vpack.c.b16 %v145, %v144
    %v173 = vpack.c.b16 %v147, %v146
    %v174 = vpack.c.b16 %v149, %v148
    %v175 = vpack.c.b16 %v151, %v150
    %v176 = vpack.c.b16 %v153, %v152
    %v177 = vpack.c.b16 %v155, %v154
    %v178 = vpack.c.b16 %v157, %v156
    %v179 = vpack.c.b16 %v159, %v158
    %v180 = vpack.c.b16 %v161, %v160
    %v181 = vpack.c.b16 %v163, %v162
    %v182 = vpack.c.b16 %v165, %v164
    %v183 = vpack.c.b16 %v167, %v166
    %v186 = vunpack.c.l.b16 %v102
    %v187 = vunpack.c.l.b16 %v103
    %v188 = vpack.c.b16 %v187, %v186
    %vm190 = vcmask 130048
    %v192 = vsel %vm190, %v168, 0
    %v195 = vsel %vm190, %v169, 0
    %v198 = vsel %vm190, %v170, 0
    %v201 = vsel %vm190, %v171, 0
    %v204 = vsel %vm190, %v172, 0
    %v207 = vsel %vm190, %v173, 0
    %v210 = vsel %vm190, %v174, 0
    %v213 = vsel %vm190, %v175, 0
    %v216 = vsel %vm190, %v176, 0
    %v219 = vsel %vm190, %v177, 0
    %v222 = vsel %vm190, %v178, 0
    %v225 = vsel %vm190, %v179, 0
    %v228 = vsel %vm190, %v180, 0
    %v231 = vsel %vm190, %v181, 0
    %v234 = vsel %vm190, %v182, 0
    %v237 = vsel %vm190, %v183, 0
    %239 = vmatprep.subr.bf16.mxu0 0
    %240 = vmatpush1.bf16.msra.mxu0 0
    %241 = vmatprep.subr.bf16.mxu0 0
    %242 = vmatpush1.bf16.msra.mxu0 0
    %243 = vmatprep.subr.bf16.mxu0 0
    %244 = vmatpush1.bf16.msra.mxu0 0
    %245 = vmatprep.subr.bf16.mxu0 0
    %246 = vmatpush1.bf16.msra.mxu0 0
    %247 = vmatprep.subr.bf16.mxu0 0
    %248 = vmatpush1.bf16.msra.mxu0 0
    %249 = vmatprep.subr.bf16.mxu0 0
    %250 = vmatpush1.bf16.msra.mxu0 0
    %251 = vmatprep.subr.bf16.mxu0 0
    %252 = vmatpush1.bf16.msra.mxu0 0
    %253 = vmatprep.subr.bf16.mxu0 0
    %254 = vmatpush1.bf16.msra.mxu0 %v188
    %255 = vmatprep.subr.bf16.mxu0 0
    %256 = vmatpush2.bf16.msra.mxu0 0
    %257 = vmatprep.subr.bf16.mxu0 0
    %258 = vmatpush2.bf16.msra.mxu0 0
    %259 = vmatprep.subr.bf16.mxu0 0
    %260 = vmatpush2.bf16.msra.mxu0 0
    %261 = vmatprep.subr.bf16.mxu0 0
    %262 = vmatpush2.bf16.msra.mxu0 0
    %263 = vmatprep.subr.bf16.mxu0 0
    %264 = vmatpush2.bf16.msra.mxu0 0
    %265 = vmatprep.subr.bf16.mxu0 0
    %266 = vmatpush2.bf16.msra.mxu0 0
    %267 = vmatprep.subr.bf16.mxu0 0
    %268 = vmatpush2.bf16.msra.mxu0 0
    %269 = vmatprep.subr.bf16.mxu0 0
    %270 = vmatpush2.bf16.msra.mxu0 0
    %271 = vmatprep.mubr.bf16.mxu0 0
    %272 = vmatmul.mubr.bf16.gmra.mxu0 %v192
    %v273 = vpop.f32.mrf.mxu0
    %v274 = vadd.f32 0.0, %v273
    %v275 = vpop.f32.mrf.mxu0
    %v276 = vpop.f32.mrf.mxu0
    %v277 = vadd.f32 0.0, %v276
    %v278 = vpop.f32.mrf.mxu0
    %279 = vmatprep.mubr.bf16.mxu0 0
    %280 = vmatmul.mubr.bf16.gmra.mxu0 %v195
    %v281 = vpop.f32.mrf.mxu0
    %v282 = vadd.f32 0.0, %v281
    %v283 = vpop.f32.mrf.mxu0
    %v284 = vpop.f32.mrf.mxu0
    %v285 = vadd.f32 0.0, %v284
    %v286 = vpop.f32.mrf.mxu0
    %287 = vmatprep.mubr.bf16.mxu0 0
    %288 = vmatmul.mubr.bf16.gmra.mxu0 %v198
    %v289 = vpop.f32.mrf.mxu0
    %v290 = vadd.f32 0.0, %v289
    %v291 = vpop.f32.mrf.mxu0
    %v292 = vpop.f32.mrf.mxu0
    %v293 = vadd.f32 0.0, %v292
    %v294 = vpop.f32.mrf.mxu0
    %295 = vmatprep.mubr.bf16.mxu0 0
    %296 = vmatmul.mubr.bf16.gmra.mxu0 %v201
    %v297 = vpop.f32.mrf.mxu0
    %v298 = vadd.f32 0.0, %v297
    %v299 = vpop.f32.mrf.mxu0
    %v300 = vpop.f32.mrf.mxu0
    %v301 = vadd.f32 0.0, %v300
    %v302 = vpop.f32.mrf.mxu0
    %303 = vmatprep.mubr.bf16.mxu0 0
    %304 = vmatmul.mubr.bf16.gmra.mxu0 %v204
    %v305 = vpop.f32.mrf.mxu0
    %v306 = vadd.f32 0.0, %v305
    %v307 = vpop.f32.mrf.mxu0
    %v308 = vpop.f32.mrf.mxu0
    %v309 = vadd.f32 0.0, %v308
    %v310 = vpop.f32.mrf.mxu0
    %311 = vmatprep.mubr.bf16.mxu0 0
    %312 = vmatmul.mubr.bf16.gmra.mxu0 %v207
    %v313 = vpop.f32.mrf.mxu0
    %v314 = vadd.f32 0.0, %v313
    %v315 = vpop.f32.mrf.mxu0
    %v316 = vpop.f32.mrf.mxu0
    %v317 = vadd.f32 0.0, %v316
    %v318 = vpop.f32.mrf.mxu0
    %319 = vmatprep.mubr.bf16.mxu0 0
    %320 = vmatmul.mubr.bf16.gmra.mxu0 %v210
    %v321 = vpop.f32.mrf.mxu0
    %v322 = vadd.f32 0.0, %v321
    %v323 = vpop.f32.mrf.mxu0
    %v324 = vpop.f32.mrf.mxu0
    %v325 = vadd.f32 0.0, %v324
    %v326 = vpop.f32.mrf.mxu0
    %327 = vmatprep.mubr.bf16.mxu0 0
    %328 = vmatmul.mubr.bf16.gmra.mxu0 %v213
    %v329 = vpop.f32.mrf.mxu0
    %v330 = vadd.f32 0.0, %v329
    %v331 = vpop.f32.mrf.mxu0
    %v332 = vpop.f32.mrf.mxu0
    %v333 = vadd.f32 0.0, %v332
    %v334 = vpop.f32.mrf.mxu0
    %335 = vmatprep.mubr.bf16.mxu0 0
    %336 = vmatmul.mubr.bf16.gmra.mxu0 %v216
    %v337 = vpop.f32.mrf.mxu0
    %v338 = vadd.f32 0.0, %v337
    %v339 = vpop.f32.mrf.mxu0
    %v340 = vpop.f32.mrf.mxu0
    %v341 = vadd.f32 0.0, %v340
    %v342 = vpop.f32.mrf.mxu0
    %343 = vmatprep.mubr.bf16.mxu0 0
    %344 = vmatmul.mubr.bf16.gmra.mxu0 %v219
    %v345 = vpop.f32.mrf.mxu0
    %v346 = vadd.f32 0.0, %v345
    %v347 = vpop.f32.mrf.mxu0
    %v348 = vpop.f32.mrf.mxu0
    %v349 = vadd.f32 0.0, %v348
    %v350 = vpop.f32.mrf.mxu0
    %351 = vmatprep.mubr.bf16.mxu0 0
    %352 = vmatmul.mubr.bf16.gmra.mxu0 %v222
    %v353 = vpop.f32.mrf.mxu0
    %v354 = vadd.f32 0.0, %v353
    %v355 = vpop.f32.mrf.mxu0
    %v356 = vpop.f32.mrf.mxu0
    %v357 = vadd.f32 0.0, %v356
    %v358 = vpop.f32.mrf.mxu0
    %359 = vmatprep.mubr.bf16.mxu0 0
    %360 = vmatmul.mubr.bf16.gmra.mxu0 %v225
    %v361 = vpop.f32.mrf.mxu0
    %v362 = vadd.f32 0.0, %v361
    %v363 = vpop.f32.mrf.mxu0
    %v364 = vpop.f32.mrf.mxu0
    %v365 = vadd.f32 0.0, %v364
    %v366 = vpop.f32.mrf.mxu0
    %367 = vmatprep.mubr.bf16.mxu0 0
    %368 = vmatmul.mubr.bf16.gmra.mxu0 %v228
    %v369 = vpop.f32.mrf.mxu0
    %v370 = vadd.f32 0.0, %v369
    %v371 = vpop.f32.mrf.mxu0
    %v372 = vpop.f32.mrf.mxu0
    %v373 = vadd.f32 0.0, %v372
    %v374 = vpop.f32.mrf.mxu0
    %375 = vmatprep.mubr.bf16.mxu0 0
    %376 = vmatmul.mubr.bf16.gmra.mxu0 %v231
    %v377 = vpop.f32.mrf.mxu0
    %v378 = vadd.f32 0.0, %v377
    %v379 = vpop.f32.mrf.mxu0
    %v380 = vpop.f32.mrf.mxu0
    %v381 = vadd.f32 0.0, %v380
    %v382 = vpop.f32.mrf.mxu0
    %383 = vmatprep.mubr.bf16.mxu0 0
    %384 = vmatmul.mubr.bf16.gmra.mxu0 %v234
    %v385 = vpop.f32.mrf.mxu0
    %v386 = vadd.f32 0.0, %v385
    %v387 = vpop.f32.mrf.mxu0
    %v388 = vpop.f32.mrf.mxu0
    %v389 = vadd.f32 0.0, %v388
    %v390 = vpop.f32.mrf.mxu0
    %391 = vmatprep.mubr.bf16.mxu0 0
    %392 = vmatmul.mubr.bf16.gmra.mxu0 %v237
    %v393 = vpop.f32.mrf.mxu0
    %v394 = vadd.f32 0.0, %v393
    %v395 = vpop.f32.mrf.mxu0
    %v396 = vpop.f32.mrf.mxu0
    %v397 = vadd.f32 0.0, %v396
    %v398 = vpop.f32.mrf.mxu0
    %399 = vdwg.mxu0
    %v400 = vpack.c.bf16 %v277, %v274
    %v401 = vpack.c.bf16 %v285, %v282
    %v402 = vpack.c.bf16 %v293, %v290
    %v403 = vpack.c.bf16 %v301, %v298
    %v404 = vpack.c.bf16 %v309, %v306
    %v405 = vpack.c.bf16 %v317, %v314
    %v406 = vpack.c.bf16 %v325, %v322
    %v407 = vpack.c.bf16 %v333, %v330
    %v408 = vpack.c.bf16 %v341, %v338
    %v409 = vpack.c.bf16 %v349, %v346
    %v410 = vpack.c.bf16 %v357, %v354
    %v411 = vpack.c.bf16 %v365, %v362
    %v412 = vpack.c.bf16 %v373, %v370
    %v413 = vpack.c.bf16 %v381, %v378
    %v414 = vpack.c.bf16 %v389, %v386
    %v415 = vpack.c.bf16 %v397, %v394
    %v416 = vld [vmem:[%s3] sm:$0x1]
    %v418 = vlaneseq
    %v419 = vshrl.u32 %v418, 7
    %v420 = vsub.s32 0, %v419
    %v421 = vrot.slane %v416, %v420
    %v455 = vunpack.c.l.b16 %v38
    %v456 = vunpack.c.h.b16 %v38
    %v457 = vunpack.c.l.b16 %v39
    %v458 = vunpack.c.h.b16 %v39
    %v459 = vunpack.c.l.b16 %v40
    %v460 = vunpack.c.h.b16 %v40
    %v461 = vunpack.c.l.b16 %v41
    %v462 = vunpack.c.h.b16 %v41
    %v463 = vunpack.c.l.b16 %v42
    %v464 = vunpack.c.h.b16 %v42
    %v465 = vunpack.c.l.b16 %v43
    %v466 = vunpack.c.h.b16 %v43
    %v467 = vunpack.c.l.b16 %v44
    %v468 = vunpack.c.h.b16 %v44
    %v469 = vunpack.c.l.b16 %v45
    %v470 = vunpack.c.h.b16 %v45
    %v471 = vunpack.c.l.b16 %v46
    %v472 = vunpack.c.h.b16 %v46
    %v473 = vunpack.c.l.b16 %v47
    %v474 = vunpack.c.h.b16 %v47
    %v475 = vunpack.c.l.b16 %v48
    %v476 = vunpack.c.h.b16 %v48
    %v477 = vunpack.c.l.b16 %v49
    %v478 = vunpack.c.h.b16 %v49
    %v479 = vunpack.c.l.b16 %v50
    %v480 = vunpack.c.h.b16 %v50
    %v481 = vunpack.c.l.b16 %v51
    %v482 = vunpack.c.h.b16 %v51
    %v483 = vunpack.c.l.b16 %v52
    %v484 = vunpack.c.h.b16 %v52
    %v485 = vunpack.c.l.b16 %v53
    %v486 = vunpack.c.h.b16 %v53
    %v487 = vunpack.c.l.b16 %v54
    %v488 = vunpack.c.h.b16 %v54
    %v489 = vunpack.c.l.b16 %v55
    %v490 = vunpack.c.h.b16 %v55
    %v491 = vunpack.c.l.b16 %v56
    %v492 = vunpack.c.h.b16 %v56
    %v493 = vunpack.c.l.b16 %v57
    %v494 = vunpack.c.h.b16 %v57
    %v495 = vunpack.c.l.b16 %v58
    %v496 = vunpack.c.h.b16 %v58
    %v497 = vunpack.c.l.b16 %v59
    %v498 = vunpack.c.h.b16 %v59
    %v499 = vunpack.c.l.b16 %v60
    %v500 = vunpack.c.h.b16 %v60
    %v501 = vunpack.c.l.b16 %v61
    %v502 = vunpack.c.h.b16 %v61
    %v503 = vunpack.c.l.b16 %v62
    %v504 = vunpack.c.h.b16 %v62
    %v505 = vunpack.c.l.b16 %v63
    %v506 = vunpack.c.h.b16 %v63
    %v507 = vunpack.c.l.b16 %v64
    %v508 = vunpack.c.h.b16 %v64
    %v509 = vunpack.c.l.b16 %v65
    %v510 = vunpack.c.h.b16 %v65
    %v511 = vunpack.c.l.b16 %v66
    %v512 = vunpack.c.h.b16 %v66
    %v513 = vunpack.c.l.b16 %v67
    %v514 = vunpack.c.h.b16 %v67
    %v515 = vunpack.c.l.b16 %v68
    %v516 = vunpack.c.h.b16 %v68
    %v517 = vunpack.c.l.b16 %v69
    %v518 = vunpack.c.h.b16 %v69
    %v519 = vpack.c.b16 %v457, %v455
    %v520 = vpack.c.b16 %v458, %v456
    %v521 = vpack.c.b16 %v461, %v459
    %v522 = vpack.c.b16 %v462, %v460
    %v523 = vpack.c.b16 %v465, %v463
    %v524 = vpack.c.b16 %v466, %v464
    %v525 = vpack.c.b16 %v469, %v467
    %v526 = vpack.c.b16 %v470, %v468
    %v527 = vpack.c.b16 %v473, %v471
    %v528 = vpack.c.b16 %v474, %v472
    %v529 = vpack.c.b16 %v477, %v475
    %v530 = vpack.c.b16 %v478, %v476
    %v531 = vpack.c.b16 %v481, %v479
    %v532 = vpack.c.b16 %v482, %v480
    %v533 = vpack.c.b16 %v485, %v483
    %v534 = vpack.c.b16 %v486, %v484
    %v535 = vpack.c.b16 %v489, %v487
    %v536 = vpack.c.b16 %v490, %v488
    %v537 = vpack.c.b16 %v493, %v491
    %v538 = vpack.c.b16 %v494, %v492
    %v539 = vpack.c.b16 %v497, %v495
    %v540 = vpack.c.b16 %v498, %v496
    %v541 = vpack.c.b16 %v501, %v499
    %v542 = vpack.c.b16 %v502, %v500
    %v543 = vpack.c.b16 %v505, %v503
    %v544 = vpack.c.b16 %v506, %v504
    %v545 = vpack.c.b16 %v509, %v507
    %v546 = vpack.c.b16 %v510, %v508
    %v547 = vpack.c.b16 %v513, %v511
    %v548 = vpack.c.b16 %v514, %v512
    %v549 = vpack.c.b16 %v517, %v515
    %v550 = vpack.c.b16 %v518, %v516
    %583 = vmatprep.subr.bf16.mxu0 0
    %584 = vmatpush1.bf16.msra.mxu0 %v407
    %585 = vmatprep.subr.bf16.mxu0 0
    %586 = vmatpush1.bf16.msra.mxu0 %v406
    %587 = vmatprep.subr.bf16.mxu0 0
    %588 = vmatpush1.bf16.msra.mxu0 %v405
    %589 = vmatprep.subr.bf16.mxu0 0
    %590 = vmatpush1.bf16.msra.mxu0 %v404
    %591 = vmatprep.subr.bf16.mxu0 0
    %592 = vmatpush1.bf16.msra.mxu0 %v403
    %593 = vmatprep.subr.bf16.mxu0 0
    %594 = vmatpush1.bf16.msra.mxu0 %v402
    %595 = vmatprep.subr.bf16.mxu0 0
    %596 = vmatpush1.bf16.msra.mxu0 %v401
    %597 = vmatprep.subr.bf16.mxu0 0
    %598 = vmatpush1.bf16.msra.mxu0 %v400
    %599 = vmatprep.subr.bf16.mxu0 0
    %600 = vmatpush2.bf16.msra.mxu0 %v415
    %601 = vmatprep.subr.bf16.mxu0 0
    %602 = vmatpush2.bf16.msra.mxu0 %v414
    %603 = vmatprep.subr.bf16.mxu0 0
    %604 = vmatpush2.bf16.msra.mxu0 %v413
    %605 = vmatprep.subr.bf16.mxu0 0
    %606 = vmatpush2.bf16.msra.mxu0 %v412
    %607 = vmatprep.subr.bf16.mxu0 0
    %608 = vmatpush2.bf16.msra.mxu0 %v411
    %609 = vmatprep.subr.bf16.mxu0 0
    %610 = vmatpush2.bf16.msra.mxu0 %v410
    %611 = vmatprep.subr.bf16.mxu0 0
    %612 = vmatpush2.bf16.msra.mxu0 %v409
    %613 = vmatprep.subr.bf16.mxu0 0
    %614 = vmatpush2.bf16.msra.mxu0 %v408
    %615 = vmatprep.mubr.bf16.mxu0 %v520
    %616 = vmatmul.mubr.bf16.gmra.mxu0 %v519
    %v617 = vpop.f32.mrf.mxu0
    %v618 = vadd.f32 %v421, %v617
    %v619 = vpop.f32.mrf.mxu0
    %v620 = vpop.f32.mrf.mxu0
    %v621 = vadd.f32 %v421, %v620
    %v622 = vpop.f32.mrf.mxu0
    %623 = vmatprep.mubr.bf16.mxu0 %v522
    %624 = vmatmul.mubr.bf16.gmra.mxu0 %v521
    %v625 = vpop.f32.mrf.mxu0
    %v626 = vadd.f32 %v421, %v625
    %v627 = vpop.f32.mrf.mxu0
    %v628 = vpop.f32.mrf.mxu0
    %v629 = vadd.f32 %v421, %v628
    %v630 = vpop.f32.mrf.mxu0
    %631 = vmatprep.mubr.bf16.mxu0 %v524
    %632 = vmatmul.mubr.bf16.gmra.mxu0 %v523
    %v633 = vpop.f32.mrf.mxu0
    %v634 = vadd.f32 %v421, %v633
    %v635 = vpop.f32.mrf.mxu0
    %v636 = vpop.f32.mrf.mxu0
    %v637 = vadd.f32 %v421, %v636
    %v638 = vpop.f32.mrf.mxu0
    %639 = vmatprep.mubr.bf16.mxu0 %v526
    %640 = vmatmul.mubr.bf16.gmra.mxu0 %v525
    %v641 = vpop.f32.mrf.mxu0
    %v642 = vadd.f32 %v421, %v641
    %v643 = vpop.f32.mrf.mxu0
    %v644 = vpop.f32.mrf.mxu0
    %v645 = vadd.f32 %v421, %v644
    %v646 = vpop.f32.mrf.mxu0
    %647 = vmatprep.mubr.bf16.mxu0 %v528
    %648 = vmatmul.mubr.bf16.gmra.mxu0 %v527
    %v649 = vpop.f32.mrf.mxu0
    %v650 = vadd.f32 %v421, %v649
    %v651 = vpop.f32.mrf.mxu0
    %v652 = vpop.f32.mrf.mxu0
    %v653 = vadd.f32 %v421, %v652
    %v654 = vpop.f32.mrf.mxu0
    %655 = vmatprep.mubr.bf16.mxu0 %v530
    %656 = vmatmul.mubr.bf16.gmra.mxu0 %v529
    %v657 = vpop.f32.mrf.mxu0
    %v658 = vadd.f32 %v421, %v657
    %v659 = vpop.f32.mrf.mxu0
    %v660 = vpop.f32.mrf.mxu0
    %v661 = vadd.f32 %v421, %v660
    %v662 = vpop.f32.mrf.mxu0
    %663 = vmatprep.mubr.bf16.mxu0 %v532
    %664 = vmatmul.mubr.bf16.gmra.mxu0 %v531
    %v665 = vpop.f32.mrf.mxu0
    %v666 = vadd.f32 %v421, %v665
    %v667 = vpop.f32.mrf.mxu0
    %v668 = vpop.f32.mrf.mxu0
    %v669 = vadd.f32 %v421, %v668
    %v670 = vpop.f32.mrf.mxu0
    %671 = vmatprep.mubr.bf16.mxu0 %v534
    %672 = vmatmul.mubr.bf16.gmra.mxu0 %v533
    %v673 = vpop.f32.mrf.mxu0
    %v674 = vadd.f32 %v421, %v673
    %v675 = vpop.f32.mrf.mxu0
    %v676 = vpop.f32.mrf.mxu0
    %v677 = vadd.f32 %v421, %v676
    %v678 = vpop.f32.mrf.mxu0
    %679 = vmatprep.mubr.bf16.mxu0 %v536
    %680 = vmatmul.mubr.bf16.gmra.mxu0 %v535
    %v681 = vpop.f32.mrf.mxu0
    %v682 = vadd.f32 %v421, %v681
    %v683 = vpop.f32.mrf.mxu0
    %v684 = vpop.f32.mrf.mxu0
    %v685 = vadd.f32 %v421, %v684
    %v686 = vpop.f32.mrf.mxu0
    %687 = vmatprep.mubr.bf16.mxu0 %v538
    %688 = vmatmul.mubr.bf16.gmra.mxu0 %v537
    %v689 = vpop.f32.mrf.mxu0
    %v690 = vadd.f32 %v421, %v689
    %v691 = vpop.f32.mrf.mxu0
    %v692 = vpop.f32.mrf.mxu0
    %v693 = vadd.f32 %v421, %v692
    %v694 = vpop.f32.mrf.mxu0
    %695 = vmatprep.mubr.bf16.mxu0 %v540
    %696 = vmatmul.mubr.bf16.gmra.mxu0 %v539
    %v697 = vpop.f32.mrf.mxu0
    %v698 = vadd.f32 %v421, %v697
    %v699 = vpop.f32.mrf.mxu0
    %v700 = vpop.f32.mrf.mxu0
    %v701 = vadd.f32 %v421, %v700
    %v702 = vpop.f32.mrf.mxu0
    %703 = vmatprep.mubr.bf16.mxu0 %v542
    %704 = vmatmul.mubr.bf16.gmra.mxu0 %v541
    %v705 = vpop.f32.mrf.mxu0
    %v706 = vadd.f32 %v421, %v705
    %v707 = vpop.f32.mrf.mxu0
    %v708 = vpop.f32.mrf.mxu0
    %v709 = vadd.f32 %v421, %v708
    %v710 = vpop.f32.mrf.mxu0
    %711 = vmatprep.mubr.bf16.mxu0 %v544
    %712 = vmatmul.mubr.bf16.gmra.mxu0 %v543
    %v713 = vpop.f32.mrf.mxu0
    %v714 = vadd.f32 %v421, %v713
    %v715 = vpop.f32.mrf.mxu0
    %v716 = vpop.f32.mrf.mxu0
    %v717 = vadd.f32 %v421, %v716
    %v718 = vpop.f32.mrf.mxu0
    %719 = vmatprep.mubr.bf16.mxu0 %v546
    %720 = vmatmul.mubr.bf16.gmra.mxu0 %v545
    %v721 = vpop.f32.mrf.mxu0
    %v722 = vadd.f32 %v421, %v721
    %v723 = vpop.f32.mrf.mxu0
    %v724 = vpop.f32.mrf.mxu0
    %v725 = vadd.f32 %v421, %v724
    %v726 = vpop.f32.mrf.mxu0
    %727 = vmatprep.mubr.bf16.mxu0 %v548
    %728 = vmatmul.mubr.bf16.gmra.mxu0 %v547
    %v729 = vpop.f32.mrf.mxu0
    %v730 = vadd.f32 %v421, %v729
    %v731 = vpop.f32.mrf.mxu0
    %v732 = vpop.f32.mrf.mxu0
    %v733 = vadd.f32 %v421, %v732
    %v734 = vpop.f32.mrf.mxu0
    %735 = vmatprep.mubr.bf16.mxu0 %v550
    %736 = vmatmul.mubr.bf16.gmra.mxu0 %v549
    %v737 = vpop.f32.mrf.mxu0
    %v738 = vadd.f32 %v421, %v737
    %v739 = vpop.f32.mrf.mxu0
    %v740 = vpop.f32.mrf.mxu0
    %v741 = vadd.f32 %v421, %v740
    %v742 = vpop.f32.mrf.mxu0
    %743 = vdwg.mxu0
    %v744 = vmax.f32 %v618, 0.0
    %v745 = vmax.f32 %v621, 0.0
    %v746 = vmax.f32 %v626, 0.0
    %v747 = vmax.f32 %v629, 0.0
    %v748 = vmax.f32 %v634, 0.0
    %v749 = vmax.f32 %v637, 0.0
    %v750 = vmax.f32 %v642, 0.0
    %v751 = vmax.f32 %v645, 0.0
    %v752 = vmax.f32 %v650, 0.0
    %v753 = vmax.f32 %v653, 0.0
    %v754 = vmax.f32 %v658, 0.0
    %v755 = vmax.f32 %v661, 0.0
    %v756 = vmax.f32 %v666, 0.0
    %v757 = vmax.f32 %v669, 0.0
    %v758 = vmax.f32 %v674, 0.0
    %v759 = vmax.f32 %v677, 0.0
    %v760 = vmax.f32 %v682, 0.0
    %v761 = vmax.f32 %v685, 0.0
    %v762 = vmax.f32 %v690, 0.0
    %v763 = vmax.f32 %v693, 0.0
    %v764 = vmax.f32 %v698, 0.0
    %v765 = vmax.f32 %v701, 0.0
    %v766 = vmax.f32 %v706, 0.0
    %v767 = vmax.f32 %v709, 0.0
    %v768 = vmax.f32 %v714, 0.0
    %v769 = vmax.f32 %v717, 0.0
    %v770 = vmax.f32 %v722, 0.0
    %v771 = vmax.f32 %v725, 0.0
    %v772 = vmax.f32 %v730, 0.0
    %v773 = vmax.f32 %v733, 0.0
    %v774 = vmax.f32 %v738, 0.0
    %v775 = vmax.f32 %v741, 0.0
    %v776 = vpack.c.bf16 %v745, %v744
    %v777 = vpack.c.bf16 %v747, %v746
    %v778 = vpack.c.bf16 %v749, %v748
    %v779 = vpack.c.bf16 %v751, %v750
    %v780 = vpack.c.bf16 %v753, %v752
    %v781 = vpack.c.bf16 %v755, %v754
    %v782 = vpack.c.bf16 %v757, %v756
    %v783 = vpack.c.bf16 %v759, %v758
    %v784 = vpack.c.bf16 %v761, %v760
    %v785 = vpack.c.bf16 %v763, %v762
    %v786 = vpack.c.bf16 %v765, %v764
    %v787 = vpack.c.bf16 %v767, %v766
    %v788 = vpack.c.bf16 %v769, %v768
    %v789 = vpack.c.bf16 %v771, %v770
    %v790 = vpack.c.bf16 %v773, %v772
    %v791 = vpack.c.bf16 %v775, %v774
    %v792 = vld [vmem:[%s4] sm:$0xf]
    %v793 = vld [vmem:[%s4 + $0x4] sm:$0xf]
    %v794 = vld [vmem:[%s4 + $0x8] sm:$0xf]
    %v795 = vld [vmem:[%s4 + $0xc] sm:$0xf]
    %v796 = vld [vmem:[%s4 + $0x10] sm:$0xf]
    %v797 = vld [vmem:[%s4 + $0x14] sm:$0xf]
    %v798 = vld [vmem:[%s4 + $0x18] sm:$0xf]
    %v799 = vld [vmem:[%s4 + $0x1c] sm:$0xf]
    %v800 = vld [vmem:[%s4 + $0x20] sm:$0xf]
    %v801 = vld [vmem:[%s4 + $0x24] sm:$0xf]
    %v802 = vld [vmem:[%s4 + $0x28] sm:$0xf]
    %v803 = vld [vmem:[%s4 + $0x2c] sm:$0xf]
    %v804 = vld [vmem:[%s4 + $0x30] sm:$0xf]
    %v805 = vld [vmem:[%s4 + $0x34] sm:$0xf]
    %v806 = vld [vmem:[%s4 + $0x38] sm:$0xf]
    %v807 = vld [vmem:[%s4 + $0x3c] sm:$0xf]
    %v824 = vunpack.c.l.b16 %v792
    %v825 = vunpack.c.l.b16 %v793
    %v826 = vunpack.c.l.b16 %v794
    %v827 = vunpack.c.l.b16 %v795
    %v828 = vunpack.c.l.b16 %v796
    %v829 = vunpack.c.l.b16 %v797
    %v830 = vunpack.c.l.b16 %v798
    %v831 = vunpack.c.l.b16 %v799
    %v832 = vunpack.c.l.b16 %v800
    %v833 = vunpack.c.l.b16 %v801
    %v834 = vunpack.c.l.b16 %v802
    %v835 = vunpack.c.l.b16 %v803
    %v836 = vunpack.c.l.b16 %v804
    %v837 = vunpack.c.l.b16 %v805
    %v838 = vunpack.c.l.b16 %v806
    %v839 = vunpack.c.l.b16 %v807
    %v840 = vpack.c.b16 %v825, %v824
    %v841 = vpack.c.b16 %v827, %v826
    %v842 = vpack.c.b16 %v829, %v828
    %v843 = vpack.c.b16 %v831, %v830
    %v844 = vpack.c.b16 %v833, %v832
    %v845 = vpack.c.b16 %v835, %v834
    %v846 = vpack.c.b16 %v837, %v836
    %v847 = vpack.c.b16 %v839, %v838
    %856 = vmatprep.subr.bf16.mxu0 0
    %857 = vmatpush1.bf16.msra.mxu0 %v847
    %858 = vmatprep.subr.bf16.mxu0 0
    %859 = vmatpush1.bf16.msra.mxu0 %v846
    %860 = vmatprep.subr.bf16.mxu0 0
    %861 = vmatpush1.bf16.msra.mxu0 %v845
    %862 = vmatprep.subr.bf16.mxu0 0
    %863 = vmatpush1.bf16.msra.mxu0 %v844
    %864 = vmatprep.subr.bf16.mxu0 0
    %865 = vmatpush1.bf16.msra.mxu0 %v843
    %866 = vmatprep.subr.bf16.mxu0 0
    %867 = vmatpush1.bf16.msra.mxu0 %v842
    %868 = vmatprep.subr.bf16.mxu0 0
    %869 = vmatpush1.bf16.msra.mxu0 %v841
    %870 = vmatprep.subr.bf16.mxu0 0
    %871 = vmatpush1.bf16.msra.mxu0 %v840
    %872 = vmatprep.subr.bf16.mxu0 0
    %873 = vmatpush2.bf16.msra.mxu0 0
    %874 = vmatprep.subr.bf16.mxu0 0
    %875 = vmatpush2.bf16.msra.mxu0 0
    %876 = vmatprep.subr.bf16.mxu0 0
    %877 = vmatpush2.bf16.msra.mxu0 0
    %878 = vmatprep.subr.bf16.mxu0 0
    %879 = vmatpush2.bf16.msra.mxu0 0
    %880 = vmatprep.subr.bf16.mxu0 0
    %881 = vmatpush2.bf16.msra.mxu0 0
    %882 = vmatprep.subr.bf16.mxu0 0
    %883 = vmatpush2.bf16.msra.mxu0 0
    %884 = vmatprep.subr.bf16.mxu0 0
    %885 = vmatpush2.bf16.msra.mxu0 0
    %886 = vmatprep.subr.bf16.mxu0 0
    %887 = vmatpush2.bf16.msra.mxu0 0
    %888 = vmatprep.mubr.bf16.mxu0 0
    %889 = vmatmul.mubr.bf16.gmra.mxu0 %v776
    %v890 = vpop.f32.mrf.mxu0
    %v891 = vadd.f32 0.0, %v890
    %v892 = vpop.f32.mrf.mxu0
    %v893 = vpop.f32.mrf.mxu0
    %v894 = vadd.f32 0.0, %v893
    %v895 = vpop.f32.mrf.mxu0
    %896 = vmatprep.mubr.bf16.mxu0 0
    %897 = vmatmul.mubr.bf16.gmra.mxu0 %v777
    %v898 = vpop.f32.mrf.mxu0
    %v899 = vadd.f32 0.0, %v898
    %v900 = vpop.f32.mrf.mxu0
    %v901 = vpop.f32.mrf.mxu0
    %v902 = vadd.f32 0.0, %v901
    %v903 = vpop.f32.mrf.mxu0
    %904 = vmatprep.mubr.bf16.mxu0 0
    %905 = vmatmul.mubr.bf16.gmra.mxu0 %v778
    %v906 = vpop.f32.mrf.mxu0
    %v907 = vadd.f32 0.0, %v906
    %v908 = vpop.f32.mrf.mxu0
    %v909 = vpop.f32.mrf.mxu0
    %v910 = vadd.f32 0.0, %v909
    %v911 = vpop.f32.mrf.mxu0
    %912 = vmatprep.mubr.bf16.mxu0 0
    %913 = vmatmul.mubr.bf16.gmra.mxu0 %v779
    %v914 = vpop.f32.mrf.mxu0
    %v915 = vadd.f32 0.0, %v914
    %v916 = vpop.f32.mrf.mxu0
    %v917 = vpop.f32.mrf.mxu0
    %v918 = vadd.f32 0.0, %v917
    %v919 = vpop.f32.mrf.mxu0
    %920 = vmatprep.mubr.bf16.mxu0 0
    %921 = vmatmul.mubr.bf16.gmra.mxu0 %v780
    %v922 = vpop.f32.mrf.mxu0
    %v923 = vadd.f32 0.0, %v922
    %v924 = vpop.f32.mrf.mxu0
    %v925 = vpop.f32.mrf.mxu0
    %v926 = vadd.f32 0.0, %v925
    %v927 = vpop.f32.mrf.mxu0
    %928 = vmatprep.mubr.bf16.mxu0 0
    %929 = vmatmul.mubr.bf16.gmra.mxu0 %v781
    %v930 = vpop.f32.mrf.mxu0
    %v931 = vadd.f32 0.0, %v930
    %v932 = vpop.f32.mrf.mxu0
    %v933 = vpop.f32.mrf.mxu0
    %v934 = vadd.f32 0.0, %v933
    %v935 = vpop.f32.mrf.mxu0
    %936 = vmatprep.mubr.bf16.mxu0 0
    %937 = vmatmul.mubr.bf16.gmra.mxu0 %v782
    %v938 = vpop.f32.mrf.mxu0
    %v939 = vadd.f32 0.0, %v938
    %v940 = vpop.f32.mrf.mxu0
    %v941 = vpop.f32.mrf.mxu0
    %v942 = vadd.f32 0.0, %v941
    %v943 = vpop.f32.mrf.mxu0
    %944 = vmatprep.mubr.bf16.mxu0 0
    %945 = vmatmul.mubr.bf16.gmra.mxu0 %v783
    %v946 = vpop.f32.mrf.mxu0
    %v947 = vadd.f32 0.0, %v946
    %v948 = vpop.f32.mrf.mxu0
    %v949 = vpop.f32.mrf.mxu0
    %v950 = vadd.f32 0.0, %v949
    %v951 = vpop.f32.mrf.mxu0
    %952 = vmatprep.mubr.bf16.mxu0 0
    %953 = vmatmul.mubr.bf16.gmra.mxu0 %v784
    %v954 = vpop.f32.mrf.mxu0
    %v955 = vadd.f32 0.0, %v954
    %v956 = vpop.f32.mrf.mxu0
    %v957 = vpop.f32.mrf.mxu0
    %v958 = vadd.f32 0.0, %v957
    %v959 = vpop.f32.mrf.mxu0
    %960 = vmatprep.mubr.bf16.mxu0 0
    %961 = vmatmul.mubr.bf16.gmra.mxu0 %v785
    %v962 = vpop.f32.mrf.mxu0
    %v963 = vadd.f32 0.0, %v962
    %v964 = vpop.f32.mrf.mxu0
    %v965 = vpop.f32.mrf.mxu0
    %v966 = vadd.f32 0.0, %v965
    %v967 = vpop.f32.mrf.mxu0
    %968 = vmatprep.mubr.bf16.mxu0 0
    %969 = vmatmul.mubr.bf16.gmra.mxu0 %v786
    %v970 = vpop.f32.mrf.mxu0
    %v971 = vadd.f32 0.0, %v970
    %v972 = vpop.f32.mrf.mxu0
    %v973 = vpop.f32.mrf.mxu0
    %v974 = vadd.f32 0.0, %v973
    %v975 = vpop.f32.mrf.mxu0
    %976 = vmatprep.mubr.bf16.mxu0 0
    %977 = vmatmul.mubr.bf16.gmra.mxu0 %v787
    %v978 = vpop.f32.mrf.mxu0
    %v979 = vadd.f32 0.0, %v978
    %v980 = vpop.f32.mrf.mxu0
    %v981 = vpop.f32.mrf.mxu0
    %v982 = vadd.f32 0.0, %v981
    %v983 = vpop.f32.mrf.mxu0
    %984 = vmatprep.mubr.bf16.mxu0 0
    %985 = vmatmul.mubr.bf16.gmra.mxu0 %v788
    %v986 = vpop.f32.mrf.mxu0
    %v987 = vadd.f32 0.0, %v986
    %v988 = vpop.f32.mrf.mxu0
    %v989 = vpop.f32.mrf.mxu0
    %v990 = vadd.f32 0.0, %v989
    %v991 = vpop.f32.mrf.mxu0
    %992 = vmatprep.mubr.bf16.mxu0 0
    %993 = vmatmul.mubr.bf16.gmra.mxu0 %v789
    %v994 = vpop.f32.mrf.mxu0
    %v995 = vadd.f32 0.0, %v994
    %v996 = vpop.f32.mrf.mxu0
    %v997 = vpop.f32.mrf.mxu0
    %v998 = vadd.f32 0.0, %v997
    %v999 = vpop.f32.mrf.mxu0
    %1000 = vmatprep.mubr.bf16.mxu0 0
    %1001 = vmatmul.mubr.bf16.gmra.mxu0 %v790
    %v1002 = vpop.f32.mrf.mxu0
    %v1003 = vadd.f32 0.0, %v1002
    %v1004 = vpop.f32.mrf.mxu0
    %v1005 = vpop.f32.mrf.mxu0
    %v1006 = vadd.f32 0.0, %v1005
    %v1007 = vpop.f32.mrf.mxu0
    %1008 = vmatprep.mubr.bf16.mxu0 0
    %1009 = vmatmul.mubr.bf16.gmra.mxu0 %v791
    %v1010 = vpop.f32.mrf.mxu0
    %v1011 = vadd.f32 0.0, %v1010
    %v1012 = vpop.f32.mrf.mxu0
    %v1013 = vpop.f32.mrf.mxu0
    %v1014 = vadd.f32 0.0, %v1013
    %v1015 = vpop.f32.mrf.mxu0
    %1016 = vdwg.mxu0
    %v1017 = vpack.c.bf16 %v894, %v891
    %v1018 = vpack.c.bf16 %v902, %v899
    %v1019 = vpack.c.bf16 %v910, %v907
    %v1020 = vpack.c.bf16 %v918, %v915
    %v1021 = vpack.c.bf16 %v926, %v923
    %v1022 = vpack.c.bf16 %v934, %v931
    %v1023 = vpack.c.bf16 %v942, %v939
    %v1024 = vpack.c.bf16 %v950, %v947
    %v1025 = vpack.c.bf16 %v958, %v955
    %v1026 = vpack.c.bf16 %v966, %v963
    %v1027 = vpack.c.bf16 %v974, %v971
    %v1028 = vpack.c.bf16 %v982, %v979
    %v1029 = vpack.c.bf16 %v990, %v987
    %v1030 = vpack.c.bf16 %v998, %v995
    %v1031 = vpack.c.bf16 %v1006, %v1003
    %v1032 = vpack.c.bf16 %v1014, %v1011
    %v1033 = vld [vmem:[%s5] sm:$0x1]
    %v1035 = vlaneseq
    %v1036 = vshrl.u32 %v1035, 7
    %v1037 = vsub.s32 0, %v1036
    %v1038 = vrot.slane %v1033, %v1037
    %1040 = vmatprep.subr.bf16.mxu0 0
    %1041 = vmatpush1.bf16.msra.mxu0 %v1024
    %1042 = vmatprep.subr.bf16.mxu0 0
    %1043 = vmatpush1.bf16.msra.mxu0 %v1023
    %1044 = vmatprep.subr.bf16.mxu0 0
    %1045 = vmatpush1.bf16.msra.mxu0 %v1022
    %1046 = vmatprep.subr.bf16.mxu0 0
    %1047 = vmatpush1.bf16.msra.mxu0 %v1021
    %1048 = vmatprep.subr.bf16.mxu0 0
    %1049 = vmatpush1.bf16.msra.mxu0 %v1020
    %1050 = vmatprep.subr.bf16.mxu0 0
    %1051 = vmatpush1.bf16.msra.mxu0 %v1019
    %1052 = vmatprep.subr.bf16.mxu0 0
    %1053 = vmatpush1.bf16.msra.mxu0 %v1018
    %1054 = vmatprep.subr.bf16.mxu0 0
    %1055 = vmatpush1.bf16.msra.mxu0 %v1017
    %1056 = vmatprep.subr.bf16.mxu0 0
    %1057 = vmatpush2.bf16.msra.mxu0 %v1032
    %1058 = vmatprep.subr.bf16.mxu0 0
    %1059 = vmatpush2.bf16.msra.mxu0 %v1031
    %1060 = vmatprep.subr.bf16.mxu0 0
    %1061 = vmatpush2.bf16.msra.mxu0 %v1030
    %1062 = vmatprep.subr.bf16.mxu0 0
    %1063 = vmatpush2.bf16.msra.mxu0 %v1029
    %1064 = vmatprep.subr.bf16.mxu0 0
    %1065 = vmatpush2.bf16.msra.mxu0 %v1028
    %1066 = vmatprep.subr.bf16.mxu0 0
    %1067 = vmatpush2.bf16.msra.mxu0 %v1027
    %1068 = vmatprep.subr.bf16.mxu0 0
    %1069 = vmatpush2.bf16.msra.mxu0 %v1026
    %1070 = vmatprep.subr.bf16.mxu0 0
    %1071 = vmatpush2.bf16.msra.mxu0 %v1025
    %1072 = vmatprep.mubr.bf16.mxu0 %v520
    %1073 = vmatmul.mubr.bf16.gmra.mxu0 %v519
    %v1074 = vpop.f32.mrf.mxu0
    %v1075 = vadd.f32 %v1038, %v1074
    %v1076 = vpop.f32.mrf.mxu0
    %v1077 = vpop.f32.mrf.mxu0
    %v1078 = vadd.f32 %v1038, %v1077
    %v1079 = vpop.f32.mrf.mxu0
    %1080 = vmatprep.mubr.bf16.mxu0 %v522
    %1081 = vmatmul.mubr.bf16.gmra.mxu0 %v521
    %v1082 = vpop.f32.mrf.mxu0
    %v1083 = vadd.f32 %v1038, %v1082
    %v1084 = vpop.f32.mrf.mxu0
    %v1085 = vpop.f32.mrf.mxu0
    %v1086 = vadd.f32 %v1038, %v1085
    %v1087 = vpop.f32.mrf.mxu0
    %1088 = vmatprep.mubr.bf16.mxu0 %v524
    %1089 = vmatmul.mubr.bf16.gmra.mxu0 %v523
    %v1090 = vpop.f32.mrf.mxu0
    %v1091 = vadd.f32 %v1038, %v1090
    %v1092 = vpop.f32.mrf.mxu0
    %v1093 = vpop.f32.mrf.mxu0
    %v1094 = vadd.f32 %v1038, %v1093
    %v1095 = vpop.f32.mrf.mxu0
    %1096 = vmatprep.mubr.bf16.mxu0 %v526
    %1097 = vmatmul.mubr.bf16.gmra.mxu0 %v525
    %v1098 = vpop.f32.mrf.mxu0
    %v1099 = vadd.f32 %v1038, %v1098
    %v1100 = vpop.f32.mrf.mxu0
    %v1101 = vpop.f32.mrf.mxu0
    %v1102 = vadd.f32 %v1038, %v1101
    %v1103 = vpop.f32.mrf.mxu0
    %1104 = vmatprep.mubr.bf16.mxu0 %v528
    %1105 = vmatmul.mubr.bf16.gmra.mxu0 %v527
    %v1106 = vpop.f32.mrf.mxu0
    %v1107 = vadd.f32 %v1038, %v1106
    %v1108 = vpop.f32.mrf.mxu0
    %v1109 = vpop.f32.mrf.mxu0
    %v1110 = vadd.f32 %v1038, %v1109
    %v1111 = vpop.f32.mrf.mxu0
    %1112 = vmatprep.mubr.bf16.mxu0 %v530
    %1113 = vmatmul.mubr.bf16.gmra.mxu0 %v529
    %v1114 = vpop.f32.mrf.mxu0
    %v1115 = vadd.f32 %v1038, %v1114
    %v1116 = vpop.f32.mrf.mxu0
    %v1117 = vpop.f32.mrf.mxu0
    %v1118 = vadd.f32 %v1038, %v1117
    %v1119 = vpop.f32.mrf.mxu0
    %1120 = vmatprep.mubr.bf16.mxu0 %v532
    %1121 = vmatmul.mubr.bf16.gmra.mxu0 %v531
    %v1122 = vpop.f32.mrf.mxu0
    %v1123 = vadd.f32 %v1038, %v1122
    %v1124 = vpop.f32.mrf.mxu0
    %v1125 = vpop.f32.mrf.mxu0
    %v1126 = vadd.f32 %v1038, %v1125
    %v1127 = vpop.f32.mrf.mxu0
    %1128 = vmatprep.mubr.bf16.mxu0 %v534
    %1129 = vmatmul.mubr.bf16.gmra.mxu0 %v533
    %v1130 = vpop.f32.mrf.mxu0
    %v1131 = vadd.f32 %v1038, %v1130
    %v1132 = vpop.f32.mrf.mxu0
    %v1133 = vpop.f32.mrf.mxu0
    %v1134 = vadd.f32 %v1038, %v1133
    %v1135 = vpop.f32.mrf.mxu0
    %1136 = vmatprep.mubr.bf16.mxu0 %v536
    %1137 = vmatmul.mubr.bf16.gmra.mxu0 %v535
    %v1138 = vpop.f32.mrf.mxu0
    %v1139 = vadd.f32 %v1038, %v1138
    %v1140 = vpop.f32.mrf.mxu0
    %v1141 = vpop.f32.mrf.mxu0
    %v1142 = vadd.f32 %v1038, %v1141
    %v1143 = vpop.f32.mrf.mxu0
    %1144 = vmatprep.mubr.bf16.mxu0 %v538
    %1145 = vmatmul.mubr.bf16.gmra.mxu0 %v537
    %v1146 = vpop.f32.mrf.mxu0
    %v1147 = vadd.f32 %v1038, %v1146
    %v1148 = vpop.f32.mrf.mxu0
    %v1149 = vpop.f32.mrf.mxu0
    %v1150 = vadd.f32 %v1038, %v1149
    %v1151 = vpop.f32.mrf.mxu0
    %1152 = vmatprep.mubr.bf16.mxu0 %v540
    %1153 = vmatmul.mubr.bf16.gmra.mxu0 %v539
    %v1154 = vpop.f32.mrf.mxu0
    %v1155 = vadd.f32 %v1038, %v1154
    %v1156 = vpop.f32.mrf.mxu0
    %v1157 = vpop.f32.mrf.mxu0
    %v1158 = vadd.f32 %v1038, %v1157
    %v1159 = vpop.f32.mrf.mxu0
    %1160 = vmatprep.mubr.bf16.mxu0 %v542
    %1161 = vmatmul.mubr.bf16.gmra.mxu0 %v541
    %v1162 = vpop.f32.mrf.mxu0
    %v1163 = vadd.f32 %v1038, %v1162
    %v1164 = vpop.f32.mrf.mxu0
    %v1165 = vpop.f32.mrf.mxu0
    %v1166 = vadd.f32 %v1038, %v1165
    %v1167 = vpop.f32.mrf.mxu0
    %1168 = vmatprep.mubr.bf16.mxu0 %v544
    %1169 = vmatmul.mubr.bf16.gmra.mxu0 %v543
    %v1170 = vpop.f32.mrf.mxu0
    %v1171 = vadd.f32 %v1038, %v1170
    %v1172 = vpop.f32.mrf.mxu0
    %v1173 = vpop.f32.mrf.mxu0
    %v1174 = vadd.f32 %v1038, %v1173
    %v1175 = vpop.f32.mrf.mxu0
    %1176 = vmatprep.mubr.bf16.mxu0 %v546
    %1177 = vmatmul.mubr.bf16.gmra.mxu0 %v545
    %v1178 = vpop.f32.mrf.mxu0
    %v1179 = vadd.f32 %v1038, %v1178
    %v1180 = vpop.f32.mrf.mxu0
    %v1181 = vpop.f32.mrf.mxu0
    %v1182 = vadd.f32 %v1038, %v1181
    %v1183 = vpop.f32.mrf.mxu0
    %1184 = vmatprep.mubr.bf16.mxu0 %v548
    %1185 = vmatmul.mubr.bf16.gmra.mxu0 %v547
    %v1186 = vpop.f32.mrf.mxu0
    %v1187 = vadd.f32 %v1038, %v1186
    %v1188 = vpop.f32.mrf.mxu0
    %v1189 = vpop.f32.mrf.mxu0
    %v1190 = vadd.f32 %v1038, %v1189
    %v1191 = vpop.f32.mrf.mxu0
    %1192 = vmatprep.mubr.bf16.mxu0 %v550
    %1193 = vmatmul.mubr.bf16.gmra.mxu0 %v549
    %v1194 = vpop.f32.mrf.mxu0
    %v1195 = vadd.f32 %v1038, %v1194
    %v1196 = vpop.f32.mrf.mxu0
    %v1197 = vpop.f32.mrf.mxu0
    %v1198 = vadd.f32 %v1038, %v1197
    %v1199 = vpop.f32.mrf.mxu0
    %1200 = vdwg.mxu0
    %vm1201 = vcmask 523264
    %1202 = vst.msk [vmem:[%s6] sm:$0xff] %vm1201, %v1075
    %1203 = vst.msk [vmem:[%s6 + $0x8] sm:$0xff] %vm1201, %v1078
    %1204 = vst.msk [vmem:[%s6 + $0x10] sm:$0xff] %vm1201, %v1083
    %1205 = vst.msk [vmem:[%s6 + $0x18] sm:$0xff] %vm1201, %v1086
    %1206 = vst.msk [vmem:[%s6 + $0x20] sm:$0xff] %vm1201, %v1091
    %1207 = vst.msk [vmem:[%s6 + $0x28] sm:$0xff] %vm1201, %v1094
    %1208 = vst.msk [vmem:[%s6 + $0x30] sm:$0xff] %vm1201, %v1099
    %1209 = vst.msk [vmem:[%s6 + $0x38] sm:$0xff] %vm1201, %v1102
    %1210 = vst.msk [vmem:[%s6 + $0x40] sm:$0xff] %vm1201, %v1107
    %1211 = vst.msk [vmem:[%s6 + $0x48] sm:$0xff] %vm1201, %v1110
    %1212 = vst.msk [vmem:[%s6 + $0x50] sm:$0xff] %vm1201, %v1115
    %1213 = vst.msk [vmem:[%s6 + $0x58] sm:$0xff] %vm1201, %v1118
    %1214 = vst.msk [vmem:[%s6 + $0x60] sm:$0xff] %vm1201, %v1123
    %1215 = vst.msk [vmem:[%s6 + $0x68] sm:$0xff] %vm1201, %v1126
    %1216 = vst.msk [vmem:[%s6 + $0x70] sm:$0xff] %vm1201, %v1131
    %1217 = vst.msk [vmem:[%s6 + $0x78] sm:$0xff] %vm1201, %v1134
    %1218 = vst.msk [vmem:[%s6 + $0x80] sm:$0xff] %vm1201, %v1139
    %1219 = vst.msk [vmem:[%s6 + $0x88] sm:$0xff] %vm1201, %v1142
    %1220 = vst.msk [vmem:[%s6 + $0x90] sm:$0xff] %vm1201, %v1147
    %1221 = vst.msk [vmem:[%s6 + $0x98] sm:$0xff] %vm1201, %v1150
    %1222 = vst.msk [vmem:[%s6 + $0xa0] sm:$0xff] %vm1201, %v1155
    %1223 = vst.msk [vmem:[%s6 + $0xa8] sm:$0xff] %vm1201, %v1158
    %1224 = vst.msk [vmem:[%s6 + $0xb0] sm:$0xff] %vm1201, %v1163
    %1225 = vst.msk [vmem:[%s6 + $0xb8] sm:$0xff] %vm1201, %v1166
    %1226 = vst.msk [vmem:[%s6 + $0xc0] sm:$0xff] %vm1201, %v1171
    %1227 = vst.msk [vmem:[%s6 + $0xc8] sm:$0xff] %vm1201, %v1174
    %1228 = vst.msk [vmem:[%s6 + $0xd0] sm:$0xff] %vm1201, %v1179
    %1229 = vst.msk [vmem:[%s6 + $0xd8] sm:$0xff] %vm1201, %v1182
    %1230 = vst.msk [vmem:[%s6 + $0xe0] sm:$0xff] %vm1201, %v1187
    %1231 = vst.msk [vmem:[%s6 + $0xe8] sm:$0xff] %vm1201, %v1190
    %1232 = vst.msk [vmem:[%s6 + $0xf0] sm:$0xff] %vm1201, %v1195
    %1233 = vst.msk [vmem:[%s6 + $0xf8] sm:$0xff] %vm1201, %v1198
    // Predicated region
    $region30: #{tpu_custom_call.1} parent=1 // pred_check
      _
    $region31: #{tpu_custom_call.1} parent=1 // pred_check_branch
      %1235 = sbr.rel (0) target = $region33
    $region32: #{tpu_custom_call.1} parent=1 // pred_region
      _
    $region33: #{tpu_custom_call.1} parent=1 // pred_fallthru
      _
    // Predicated region
    $region34: #{tpu_custom_call.1} parent=1 // pred_check
      _
    $region35: #{tpu_custom_call.1} parent=1 // pred_check_branch
      %1237 = sbr.rel (0) target = $region37
    $region36: #{tpu_custom_call.1} parent=1 // pred_region
      _
    $region37: #{tpu_custom_call.1} parent=1 // pred_fallthru
      _
    %1238 = vsyncpa [#allocation3], 1

</llo_original>
